<compile_context>
chip_gen: v7x
topology: tpu7x:2x2x1
jax: 0.10.0
libtpu: 0.0.40
codegen_flags: <defaults>
</compile_context>

<pallas_src>
import jax
import jax.numpy as jnp
from jax.experimental import pallas as pl
from jax.experimental.pallas import tpu as pltpu

# Fixed (detached) backlash constants from the module.
M_LO = 0.6847
M_UP = 0.7132
C_LO = 0.4703
C_UP = 0.3338

_LANE = 128
# (4096, 128) f32 block = 2 MiB per array per buffer; 3 arrays x 2 buffers =
# 12 MiB total -> fits v5e's 16 MiB scoped-VMEM default (and v6e/v7x 32 MiB).
_DEFAULT_MAX_BLOCK_ROWS = 4096


def _round_up(v, m):
    return -(-v // m) * m


def _backlash_math(x, prev):
    """Elementwise backlash math, shared by the kernel body and the ragged tail."""
    dt = x.dtype
    m_lo = jnp.asarray(M_LO, dtype=dt)
    m_up = jnp.asarray(M_UP, dtype=dt)
    c_lo = jnp.asarray(C_LO, dtype=dt)
    c_up = jnp.asarray(C_UP, dtype=dt)

    # m_lo*x + m_lo*c_lo and m_up*x + m_up*c_up, in the reference fp order
    # (the compiler constant-folds m*c at the working precision).
    lo = m_lo * x + m_lo * c_lo
    up = m_up * x + m_up * c_up

    # h(s) = 1 iff s <= 0.  The divisions by the positive slopes in the
    # reference only rescale s, so only the numerator's sign matters.
    f1 = (lo - prev) <= 0          # == h((m_lo*x + m_lo*c_lo - prev) / m_lo)
    f2 = (prev - up) <= 0          # == h((prev - m_up*x - m_up*c_up) / m_up)

    zero = jnp.zeros_like(x)
    # 4-case table identical to the reference (f1 & f2 -> lo + up):
    #   f1=1,f2=0 -> lo ; f1=0,f2=1 -> up ; f1=1,f2=1 -> lo+up ; else -> prev
    return jnp.where(f1, lo, zero) + jnp.where(f2, up, jnp.where(f1, zero, prev))


def _backlash_kernel(x_ref, prev_ref, out_ref):
    out_ref[...] = _backlash_math(x_ref[...], prev_ref[...]).astype(out_ref.dtype)


def _backlash_2d(x2, p2, max_block_rows):
    """Run the kernel over a lane-dense (rows, 128) slab."""
    rows, lanes = x2.shape

    if rows <= max_block_rows:
        block_rows = rows                 # single block == full array dim
        grid_len = 1
    else:
        # Even number of blocks so both v7x TensorCores get work, and sizes
        # re-balanced so there is no tiny straggler block.
        nblocks = _round_up(-(-rows // max_block_rows), 2)
        block_rows = _round_up(-(-rows // nblocks), 8)   # <= max_block_rows
        grid_len = -(-rows // block_rows)

    spec = pl.BlockSpec((block_rows, lanes), lambda i: (i, 0))

    return pl.pallas_call(
        _backlash_kernel,
        out_shape=jax.ShapeDtypeStruct((rows, lanes), x2.dtype),
        grid_spec=pltpu.PrefetchScalarGridSpec(
            num_scalar_prefetch=0,
            grid=(grid_len,),
            in_specs=[spec, spec],
            out_specs=spec,
        ),
        compiler_params=pltpu.CompilerParams(
            dimension_semantics=("parallel",)),
    )(x2, p2)


def fixed_backlash(x, out_prev, *, max_block_rows=_DEFAULT_MAX_BLOCK_ROWS):
    """Elementwise backlash op. x and out_prev must have the same shape."""
    assert x.shape == out_prev.shape, "x and _out_prev must have the same shape"
    assert max_block_rows % 8 == 0, "max_block_rows must be a multiple of 8"
    orig_shape = x.shape
    n = x.size

    xf = x.reshape(-1)
    pf = out_prev.reshape(-1)

    n_main = (n // _LANE) * _LANE
    rows = n_main // _LANE

    if rows == 0:
        # Fewer than 128 elements: a kernel launch is pure overhead.
        return _backlash_math(xf, pf).reshape(orig_shape)

    if n_main == n:
        # Common case (e.g. NCHW with H*W a multiple of 128): copy-free path.
        out2 = _backlash_2d(xf.reshape(rows, _LANE),
                            pf.reshape(rows, _LANE), max_block_rows)
        return out2.reshape(orig_shape)

    # Ragged path: 128-aligned prefix through the kernel, <128-element tail via
    # the trivial fused jnp expression, single concat (no pad/slice round-trip).
    out_main = _backlash_2d(xf[:n_main].reshape(rows, _LANE),
                            pf[:n_main].reshape(rows, _LANE),
                            max_block_rows).reshape(-1)
    out_tail = _backlash_math(xf[n_main:], pf[n_main:])
    return jnp.concatenate([out_main, out_tail]).reshape(orig_shape)


def _reference(x, out_prev):
    # Pure-JAX reference mirroring the PyTorch forward exactly.
    m_lo = jnp.float32(M_LO)
    m_up = jnp.float32(M_UP)
    c_lo = jnp.float32(C_LO)
    c_up = jnp.float32(C_UP)

    def h(s):
        return jnp.where(s > 0, 0.0, 1.0).astype(s.dtype)

    f1 = h((m_lo * x + m_lo * c_lo - out_prev) / m_lo)
    f2 = h((out_prev - m_up * x - m_up * c_up) / m_up)
    return (m_lo * x * f1 + m_lo * c_lo * f1
            + m_up * x * f2 + m_up * c_up * f2
            + out_prev * (1.0 - f1) * (1.0 - f2))


if __name__ == "__main__":
    key = jax.random.PRNGKey(0)
    k1, k2, k3, k4, k5, k6, k7, k8 = jax.random.split(key, 8)

    # Primary: small NCHW input (module is elementwise / shape-agnostic).
    x = jax.random.normal(k1, (2, 4, 16, 16), dtype=jnp.float32)
    prev = jax.random.normal(k2, (2, 4, 16, 16), dtype=jnp.float32)
    out = jax.block_until_ready(fixed_backlash(x, prev))
    assert out.shape == x.shape and out.dtype == x.dtype
    assert jnp.allclose(out, _reference(x, prev), atol=1e-5, rtol=1e-5), \
        "mismatch vs reference (primary)"

    # Multi-block, balanced grid path (rows=96, max=64 -> 2 blocks of 48 rows).
    xb = jax.random.normal(k3, (2, 6, 32, 32), dtype=jnp.float32)
    pb = jax.random.normal(k4, (2, 6, 32, 32), dtype=jnp.float32)
    outb = jax.block_until_ready(fixed_backlash(xb, pb, max_block_rows=64))
    assert jnp.allclose(outb, _reference(xb, pb), atol=1e-5, rtol=1e-5), \
        "mismatch vs reference (multi-block)"

    # Ragged path (n % 128 != 0 -> aligned prefix via kernel + jnp tail).
    xr = jax.random.normal(k5, (3, 5, 7, 11), dtype=jnp.float32)
    pr = jax.random.normal(k6, (3, 5, 7, 11), dtype=jnp.float32)
    outr = jax.block_until_ready(fixed_backlash(xr, pr))
    assert outr.shape == xr.shape
    assert jnp.allclose(outr, _reference(xr, pr), atol=1e-5, rtol=1e-5), \
        "mismatch vs reference (ragged)"

    # Tiny path (< 128 elements -> no kernel launch).
    xt = jax.random.normal(k7, (2, 3, 4, 5), dtype=jnp.float32)
    pt = jax.random.normal(k8, (2, 3, 4, 5), dtype=jnp.float32)
    outt = jax.block_until_ready(fixed_backlash(xt, pt))
    assert jnp.allclose(outt, _reference(xt, pt), atol=1e-5, rtol=1e-5), \
        "mismatch vs reference (tiny)"

    print("KERNEL_OK")
</pallas_src>

<mosaic_0001>
module attributes {stable_mosaic.version = 11 : i64} {
  func.func @_backlash_kernel(%arg0: i32, %arg1: memref<16x128xf32, #tpu.memory_space<vmem>>, %arg2: memref<16x128xf32, #tpu.memory_space<vmem>>, %arg3: memref<16x128xf32, #tpu.memory_space<vmem>>) attributes {dimension_semantics = [#tpu.dimension_semantics<parallel>], iteration_bounds = array<i64: 1>, scalar_prefetch = 0 : i64, scratch_operands = 0 : i64, tpu.core_type = #tpu.core_type<tc>, window_params = [{transform_indices = @transform_0, window_bounds = array<i64: 16, 128>}, {transform_indices = @transform_1, window_bounds = array<i64: 16, 128>}, {transform_indices = @transform_2, window_bounds = array<i64: 16, 128>}]} {
    %c0 = arith.constant 0 : index
    %c0_0 = arith.constant 0 : index
    %0 = vector.load %arg1[%c0, %c0_0] : memref<16x128xf32, #tpu.memory_space<vmem>>, vector<16x128xf32>
    %c0_1 = arith.constant 0 : index
    %c0_2 = arith.constant 0 : index
    %1 = vector.load %arg2[%c0_1, %c0_2] : memref<16x128xf32, #tpu.memory_space<vmem>>, vector<16x128xf32>
    %cst = arith.constant 6.847000e-01 : f32
    %2 = vector.broadcast %cst : f32 to vector<16x128xf32>
    %3 = arith.mulf %2, %0 : vector<16x128xf32>
    %cst_3 = arith.constant 6.847000e-01 : f32
    %cst_4 = arith.constant 4.703000e-01 : f32
    %4 = arith.mulf %cst_3, %cst_4 : f32
    %5 = vector.broadcast %4 : f32 to vector<16x128xf32>
    %6 = arith.addf %3, %5 : vector<16x128xf32>
    %cst_5 = arith.constant 7.132000e-01 : f32
    %7 = vector.broadcast %cst_5 : f32 to vector<16x128xf32>
    %8 = arith.mulf %7, %0 : vector<16x128xf32>
    %cst_6 = arith.constant 7.132000e-01 : f32
    %cst_7 = arith.constant 3.338000e-01 : f32
    %9 = arith.mulf %cst_6, %cst_7 : f32
    %10 = vector.broadcast %9 : f32 to vector<16x128xf32>
    %11 = arith.addf %8, %10 : vector<16x128xf32>
    %12 = arith.subf %6, %1 : vector<16x128xf32>
    %cst_8 = arith.constant 0.000000e+00 : f32
    %13 = vector.broadcast %cst_8 : f32 to vector<16x128xf32>
    %14 = arith.cmpf ole, %12, %13 : vector<16x128xf32>
    %15 = arith.subf %1, %11 : vector<16x128xf32>
    %cst_9 = arith.constant 0.000000e+00 : f32
    %16 = vector.broadcast %cst_9 : f32 to vector<16x128xf32>
    %17 = arith.cmpf ole, %15, %16 : vector<16x128xf32>
    %cst_10 = arith.constant 0.000000e+00 : f32
    %18 = vector.broadcast %cst_10 : f32 to vector<16x128xf32>
    %19 = arith.select %14, %6, %18 : vector<16x128xi1>, vector<16x128xf32>
    %20 = arith.select %14, %18, %1 : vector<16x128xi1>, vector<16x128xf32>
    %21 = arith.select %17, %11, %20 : vector<16x128xi1>, vector<16x128xf32>
    %22 = arith.addf %19, %21 : vector<16x128xf32>
    %c0_11 = arith.constant 0 : index
    %c0_12 = arith.constant 0 : index
    %23 = vector.load %arg3[%c0_11, %c0_12] : memref<16x128xf32, #tpu.memory_space<vmem>>, vector<16x128xf32>
    tpu.vector_store %arg3[%c0_11, %c0_12], %22 {strides = array<i32>} : memref<16x128xf32, #tpu.memory_space<vmem>>, vector<16x128xf32>,
    return
  }
  func.func @transform_0(%arg0: i32) -> (i32, i32) {
    %c0_i32 = arith.constant 0 : i32
    %c0_i32_0 = arith.constant 0 : i32
    return %arg0, %c0_i32 : i32, i32
  }
  func.func @transform_1(%arg0: i32) -> (i32, i32) {
    %c0_i32 = arith.constant 0 : i32
    %c0_i32_0 = arith.constant 0 : i32
    return %arg0, %c0_i32 : i32, i32
  }
  func.func @transform_2(%arg0: i32) -> (i32, i32) {
    %c0_i32 = arith.constant 0 : i32
    %c0_i32_0 = arith.constant 0 : i32
    return %arg0, %c0_i32 : i32, i32
  }
}

</mosaic_0001>

<llo_original>
// kernel: tpu_custom_call.1
$region0: #{tpu_custom_call.1}
  #allocation0 [shape = 'u32[]', space=smem, size = 0x4, offset = 0x4, fixed_abs, tag = 'smem constant byte address 0x4 - core index']
  #allocation1 [shape = 'u32[144,128]{1,0:T(1,128)}', space=vmem, size = 0x12000, scoped, tag = 'internal scratch']
  %s0 = inlined_call_operand.hbm [shape: f32[16,128], index: 0, kind: input, shape index: {}]
  %s1 = inlined_call_operand.hbm [shape: f32[16,128], index: 1, kind: input, shape index: {}]
  %s2 = inlined_call_operand.hbm [shape: f32[16,128], index: 2, kind: output, shape index: {}]
  %s3 = sld [smem:[#allocation0]]
  $region26: #{tpu_custom_call.1} parent=0
    _
  %s5 = ssub.s32 1, %s3
  %s6 = scalar_select 0, %s5, %s3
  $region1: #{tpu_custom_call.1} parent=0
    #allocation2 [shape = 'u8[8192]{0}', space=vmem, size = 0x2000, scoped, tag = 'input window, operand 0, single buffered']
    #allocation3 [shape = 's32[1]{0}', space=sflag, size = 0x4, scoped, tag = 'scoped memory for tpu_custom_call.1']
    #allocation4 [shape = 's32[1]{0}', space=sflag, size = 0x4, scoped, tag = 'scoped memory for tpu_custom_call.1']
    #allocation5 [shape = 'u8[8192]{0}', space=vmem, size = 0x2000, scoped, tag = 'input window, operand 1, single buffered']
    #allocation6 [shape = 's32[1]{0}', space=sflag, size = 0x4, scoped, tag = 'scoped memory for tpu_custom_call.1']
    #allocation7 [shape = 'u8[8192]{0}', space=vmem, size = 0x2000, scoped, tag = 'output window, operand 0, single buffered']
    %7 = vsyncpa [#allocation3], 0
    %8 = vsyncpa [#allocation6], 0
    %9 = vsyncpa [#allocation4], 0
    // Predicated region
    $region2: #{tpu_custom_call.1} parent=1 // pred_check
      _
    $region3: #{tpu_custom_call.1} parent=1 // pred_check_branch
      %11 = sbr.rel (0) target = $region5
    $region4: #{tpu_custom_call.1} parent=1 // pred_region
      %s13 = ssub.s32 256, 256
      %14 = vsyncadd [#allocation3], %s13
      %s15 = sshll.u32 [#allocation2], 4
      %s16 = int_to_ptr.vmem [resolvable:$true] %s15
      %21 = dma.hbm_to_vmem [thread:$0]  %s0, 256, %s16, [#allocation3], 128, 128, 8
    $region5: #{tpu_custom_call.1} parent=1 // pred_fallthru
      _
    // Predicated region
    $region6: #{tpu_custom_call.1} parent=1 // pred_check
      _
    $region7: #{tpu_custom_call.1} parent=1 // pred_check_branch
      %23 = sbr.rel (0) target = $region9
    $region8: #{tpu_custom_call.1} parent=1 // pred_region
      %s25 = ssub.s32 256, 256
      %26 = vsyncadd [#allocation6], %s25
      %s27 = sshll.u32 [#allocation5], 4
      %s28 = int_to_ptr.vmem [resolvable:$true] %s27
      %33 = dma.hbm_to_vmem [thread:$0]  %s1, 256, %s28, [#allocation6], 128, 128, 8
    $region9: #{tpu_custom_call.1} parent=1 // pred_fallthru
      _
    // Predicated region
    $region10: #{tpu_custom_call.1} parent=1 // pred_check
      _
    $region11: #{tpu_custom_call.1} parent=1 // pred_check_branch
      %35 = sbr.rel (0) target = $region13
    $region12: #{tpu_custom_call.1} parent=1 // pred_region
      %36 = dma.done [#allocation3], 256
    $region13: #{tpu_custom_call.1} parent=1 // pred_fallthru
      _
    // Predicated region
    $region14: #{tpu_custom_call.1} parent=1 // pred_check
      _
    $region15: #{tpu_custom_call.1} parent=1 // pred_check_branch
      %38 = sbr.rel (0) target = $region17
    $region16: #{tpu_custom_call.1} parent=1 // pred_region
      %39 = dma.done [#allocation6], 256
    $region17: #{tpu_custom_call.1} parent=1 // pred_fallthru
      _
    %v40 = vld [vmem:[#allocation2] sm:$0xff]
    %v41 = vld [vmem:[#allocation2 + $0x8] sm:$0xff]
    %v42 = vld [vmem:[#allocation5] sm:$0xff]
    %v43 = vld [vmem:[#allocation5 + $0x8] sm:$0xff]
    %v44 = vmul.f32 %v40, 0.6847
    %v45 = vmul.f32 %v41, 0.6847
    %v46 = vadd.f32 %v44, 0.32201442
    %v47 = vadd.f32 %v45, 0.32201442
    %v48 = vmul.f32 %v40, 0.7132
    %v49 = vmul.f32 %v41, 0.7132
    %v50 = vadd.f32 %v48, 0.23806614
    %v51 = vadd.f32 %v49, 0.23806614
    %v52 = vsub.f32 %v46, %v42
    %v53 = vsub.f32 %v47, %v43
    %vm54 = vcmp.le.f32.partialorder %v52, 0.0
    %vm55 = vcmp.le.f32.partialorder %v53, 0.0
    %v56 = vsub.f32 %v42, %v50
    %v57 = vsub.f32 %v43, %v51
    %vm58 = vcmp.le.f32.partialorder %v56, 0.0
    %vm59 = vcmp.le.f32.partialorder %v57, 0.0
    %v60 = vsel %vm54, %v46, 0.0
    %v61 = vsel %vm55, %v47, 0.0
    %v62 = vsel %vm54, 0.0, %v42
    %v63 = vsel %vm55, 0.0, %v43
    %v64 = vsel %vm58, %v50, %v62
    %v65 = vsel %vm59, %v51, %v63
    %v66 = vadd.f32 %v60, %v64
    %v67 = vadd.f32 %v61, %v65
    %68 = vst [vmem:[#allocation7] sm:$0xff] %v66
    %69 = vst [vmem:[#allocation7 + $0x8] sm:$0xff] %v67
    // Predicated region
    $region18: #{tpu_custom_call.1} parent=1 // pred_check
      _
    $region19: #{tpu_custom_call.1} parent=1 // pred_check_branch
      %71 = sbr.rel (0) target = $region21
    $region20: #{tpu_custom_call.1} parent=1 // pred_region
      %s73 = ssub.s32 256, 256
      %74 = vsyncadd [#allocation4], %s73
      %s75 = sshll.u32 [#allocation7], 4
      %s76 = int_to_ptr.vmem [resolvable:$true] %s75
      %81 = dma.vmem_to_hbm [thread:$0]  %s76, 256, %s2, [#allocation4], 128, 128, 8
    $region21: #{tpu_custom_call.1} parent=1 // pred_fallthru
      _
    // Predicated region
    $region22: #{tpu_custom_call.1} parent=1 // pred_check
      _
    $region23: #{tpu_custom_call.1} parent=1 // pred_check_branch
      %83 = sbr.rel (0) target = $region25
    $region24: #{tpu_custom_call.1} parent=1 // pred_region
      %84 = dma.done [#allocation4], 256
    $region25: #{tpu_custom_call.1} parent=1 // pred_fallthru
      _
    %85 = vsyncpa [#allocation3], 1
    %86 = vsyncpa [#allocation6], 1
    %87 = vsyncpa [#allocation4], 1

</llo_original>
